<compile_context>
chip_gen: v7x
topology: tpu7x:2x2x1
jax: 0.10.0
libtpu: 0.0.40
codegen_flags: <defaults>
</compile_context>

<pallas_src>
import functools
import math

import jax
import jax.numpy as jnp
import numpy as np
from jax import lax
from jax.experimental import pallas as pl
from jax.experimental.pallas import tpu as pltpu


# ---------------------------------------------------------------------------
# Generation-aware VMEM budgeting + head-group selection.
# ---------------------------------------------------------------------------
def _tpu_vmem_capacity():
    try:
        info = pltpu.get_tpu_info()
        cap = getattr(info, "vmem_capacity_bytes", None)
        if cap:
            return int(cap)
    except Exception:
        pass
    return 128 << 20                       # v5e / v6e default if query unavailable


def _vmem_plan():
    """(per-step working-set budget, scoped vmem_limit_bytes)."""
    phys = _tpu_vmem_capacity()
    if phys >= (100 << 20):                # v5e / v6e: 128 MiB physical
        return 28 << 20, 64 << 20
    return 14 << 20, 32 << 20              # v7x-class: 64 MiB physical


def _step_bytes(g, L_Q, L_K, L_V, D, u):
    """Per-grid-step VMEM working set for head-group size g (double-buffered
    pipeline blocks + in-kernel intermediates), max over kernel 1 / kernel 2."""
    bf, f4 = 2, 4
    k1 = (L_Q * L_K * bf * 2                     # additive bias (resident, 2 bufs)
          + g * (L_Q + L_K) * D * bf * 2         # Q, K blocks (bf16)
          + g * L_Q * D * f4 * 2                 # kc block (f32)
          + g * L_Q * f4 * 2                     # M output block
          + g * L_Q * L_K * f4 * 2               # S and S+bias intermediates
          + g * L_Q * D * f4)                    # q_f32 * kc intermediate
    k2 = (g * (L_Q + L_K + L_V) * D * bf * 2     # Q, K, V blocks (bf16)
          + g * u * 4 * 2                        # m_top block (int32)
          + g * L_Q * D * f4 * 2                 # context output block (f32)
          + g * u * L_Q * (bf + f4)              # one-hot sel (bf16) + iota/eq
          + g * u * (L_K + D) * (f4 + bf)        # scores/tmp (f32) + bf16 casts
          + g * u * L_V * f4                     # ctx_in
          + g * L_V * D * f4)                    # V upcast for the mean
    return max(k1, k2)


def _pick_group(BH, L_Q, L_K, L_V, D, u, budget):
    """Largest head-group G (G | BH) whose working set fits `budget`, preferring
    an even number of grid steps >= 4 so v7x's two TensorCores stay balanced and
    each keeps at least one prefetch in flight."""
    divisors = [g for g in range(1, BH + 1) if BH % g == 0]
    fits = lambda g: _step_bytes(g, L_Q, L_K, L_V, D, u) <= budget
    for ok_steps in (lambda n: n >= 4 and n % 2 == 0,   # balanced dual-TC + pipeline
                     lambda n: n >= 2,                  # at least two grid steps
                     lambda n: True):
        cands = [g for g in divisors if ok_steps(BH // g) and fits(g)]
        if cands:
            return max(cands)
    return 1


# ---------------------------------------------------------------------------
# Kernel 1: fused sparsity measure M.  S = Q @ K^T lives only in VMEM.
#   multiset max  over sampled keys == max_k (S + bias)      (bias = 0 / -1e30)
#   multiset sum  over sampled keys == sum_k counts*S == sum_d Q * (counts @ K)
# (counts @ K is hoisted to one XLA MXU einsum over all heads -> only the
#  D-wide q*kc reduce remains in-kernel.)
# ---------------------------------------------------------------------------
def _sparsity_kernel(bias_ref, q_ref, k_ref, kc_ref, m_ref):
    q = q_ref[...]                                     # (G, L_Q, D)  bf16
    k = k_ref[...]                                     # (G, L_K, D)  bf16
    kc = kc_ref[...]                                   # (G, L_Q, D)  f32
    bias = bias_ref[...].astype(jnp.float32)           # (L_Q, L_K)   once per step
    l_k = k.shape[1]
    s = lax.dot_general(q, k, (((2,), (2,)), ((0,), (0,))),
                        preferred_element_type=jnp.float32)          # (G, L_Q, L_K)
    m_max = jnp.max(s + bias[None], axis=-1)                         # (G, L_Q)
    m_sum = jnp.sum(q.astype(jnp.float32) * kc, axis=-1)             # (G, L_Q)
    m_ref[0] = m_max - m_sum * (1.0 / l_k)


def _sparsity_measure(q, k, kc, bias, G, vmem_limit):
    BH, L_Q, D = q.shape
    _, L_K, _ = k.shape
    n_groups = BH // G
    out = pl.pallas_call(
        _sparsity_kernel,
        out_shape=jax.ShapeDtypeStruct((n_groups, G, L_Q), jnp.float32),
        grid=(n_groups,),
        in_specs=[
            pl.BlockSpec((L_Q, L_K), lambda i: (0, 0)),        # shared bias (resident)
            pl.BlockSpec((G, L_Q, D), lambda i: (i, 0, 0)),
            pl.BlockSpec((G, L_K, D), lambda i: (i, 0, 0)),
            pl.BlockSpec((G, L_Q, D), lambda i: (i, 0, 0)),
        ],
        out_specs=pl.BlockSpec((1, G, L_Q), lambda i: (i, 0, 0)),
        compiler_params=pltpu.CompilerParams(
            dimension_semantics=("parallel",), vmem_limit_bytes=vmem_limit),
    )(bias, q, k, kc)
    return out.reshape(BH, L_Q)


# ---------------------------------------------------------------------------
# Kernel 2: fused top-row scoring + context (bf16 MXU operands, f32 accum).
#   q_top   = Q[m_top]                     (one-hot MXU gather, exact in bf16)
#   context = mean(V, -2) + ((q_top @ K^T) @ Q) * scale @ V^T
# (re-associated; identical to scores_top @ (Q @ V^T) since L_K == L_Q)
# ---------------------------------------------------------------------------
def _context_kernel(scale, idx_ref, q_ref, k_ref, v_ref, o_ref):
    idx = idx_ref[0]                                   # (G, u)      int32
    q = q_ref[...]                                     # (G, L_Q, D) bf16
    k = k_ref[...]                                     # (G, L_K, D) bf16
    v = v_ref[...]                                     # (G, L_V, D) bf16
    g, u = idx.shape
    l_q = q.shape[1]

    # One-hot row gather of Q[m_top] on the MXU; exact row copy -> emit bf16.
    sel = (lax.broadcasted_iota(jnp.int32, (g, u, l_q), 2)
           == idx[:, :, None]).astype(jnp.bfloat16)                  # (G, u, L_Q)
    q_top = lax.dot_general(sel, q, (((2,), (1,)), ((0,), (0,))),
                            preferred_element_type=jnp.bfloat16)     # (G, u, D)

    # Unscaled scores (scale is folded onto the smaller (G,u,D) intermediate).
    scores = lax.dot_general(q_top, k, (((2,), (2,)), ((0,), (0,))),
                             preferred_element_type=jnp.float32)     # (G, u, L_K)

    tmp = lax.dot_general(scores.astype(jnp.bfloat16), q,
                          (((2,), (1,)), ((0,), (0,))),
                          preferred_element_type=jnp.float32)        # (G, u, D)
    ctx_in = lax.dot_general((tmp * scale).astype(jnp.bfloat16), v,
                             (((2,), (2,)), ((0,), (0,))),
                             preferred_element_type=jnp.float32)     # (G, u, L_V)

    v_mean = jnp.mean(v.astype(jnp.float32), axis=1, keepdims=True)  # (G, 1, D)
    # TODO(synk): lane-dense / (B, L_Q, H, D)-direct output store (needs a
    #   per-head strided write or an in-kernel major-dim transpose).
    o_ref[...] = v_mean + ctx_in            # requires u == L_Q, L_V == D (wrapper)


def _sparse_context(q, k, v, m_top_grouped, scale, G, vmem_limit):
    BH, L_Q, D = q.shape
    _, L_K, _ = k.shape
    _, L_V, _ = v.shape
    n_groups, _, u = m_top_grouped.shape
    return pl.pallas_call(
        functools.partial(_context_kernel, scale),
        out_shape=jax.ShapeDtypeStruct((BH, L_Q, D), jnp.float32),
        grid=(n_groups,),
        in_specs=[
            pl.BlockSpec((1, G, u), lambda i: (i, 0, 0)),
            pl.BlockSpec((G, L_Q, D), lambda i: (i, 0, 0)),
            pl.BlockSpec((G, L_K, D), lambda i: (i, 0, 0)),
            pl.BlockSpec((G, L_V, D), lambda i: (i, 0, 0)),
        ],
        out_specs=pl.BlockSpec((G, L_Q, D), lambda i: (i, 0, 0)),
        compiler_params=pltpu.CompilerParams(
            dimension_semantics=("parallel",), vmem_limit_bytes=vmem_limit),
    )(m_top_grouped, q, k, v)


# ---------------------------------------------------------------------------
# ProbAttention forward (JAX glue + Pallas hot paths)
# ---------------------------------------------------------------------------
def prob_attention_forward(queries, keys, values, attn_mask=None,
                           *, rng_key, factor=5, scale=None):
    """queries/keys/values: (B, L, H, D) float32. Returns (context, None)."""
    del attn_mask   # the reference module's forward never reads it
    B, L_Q, H, D = queries.shape
    _, L_K, _, _ = keys.shape
    _, L_V, _, _ = values.shape

    U_part = min(factor * int(math.ceil(math.log(L_K))), L_K)
    u = min(factor * int(math.ceil(math.log(L_Q))), L_Q)

    if not (L_K == L_Q and L_V == D and u == L_Q):
        # TODO(synk): general ProbSparse regime (u < L_Q, L_V != D) needs the
        # canonical scatter-style context update; the reference forward does not
        # type-check there, so it is intentionally unsupported.
        raise ValueError(
            "ProbAttention reference semantics require L_K == L_Q, L_V == D and u == L_Q")

    BH = B * H
    # (B, L, H, D) -> (B, H, L, D) -> (BH, L, D); bf16 operands for the MXU.
    q = jnp.transpose(queries, (0, 2, 1, 3)).reshape(BH, L_Q, D).astype(jnp.bfloat16)
    k = jnp.transpose(keys, (0, 2, 1, 3)).reshape(BH, L_K, D).astype(jnp.bfloat16)
    v = jnp.transpose(values, (0, 2, 1, 3)).reshape(BH, L_V, D).astype(jnp.bfloat16)

    # index_sample ~ randint(0, L_K, (L_Q, U_part)) shared across batch & heads,
    # exactly as in the torch code (torch global RNG replaced by the jax PRNG).
    # It is converted into (a) a per-(query,key) multiplicity matrix `counts`
    # and (b) an additive mask `bias`, so the sampled max / sum are dense work.
    index_sample = jax.random.randint(rng_key, (L_Q, U_part), 0, L_K)
    counts = jnp.zeros((L_Q, L_K), jnp.float32).at[
        jnp.arange(L_Q)[:, None], index_sample].add(1.0)
    bias = jnp.where(counts > 0.0, 0.0, -1e30).astype(jnp.bfloat16)   # (L_Q, L_K)
    # Re-associated sampled-sum operand: kc[b,l,:] = counts[l,:] @ K[b].  One MXU
    # einsum over all heads (counts <= U_part, exact in bf16; f32 accumulation).
    kc = jnp.einsum("lk,bkd->bld", counts.astype(jnp.bfloat16), k,
                    preferred_element_type=jnp.float32)               # (BH, L_Q, D)

    budget, vmem_limit = _vmem_plan()
    G = _pick_group(BH, L_Q, L_K, L_V, D, u, budget)
    n_groups = BH // G

    M = _sparsity_measure(q, k, kc, bias, G, vmem_limit)     # (BH, L_Q)  f32
    _, m_top = jax.lax.top_k(M, u)                           # (BH, u)    int32

    scale_v = float(scale) if scale else 1.0 / math.sqrt(D)
    m_top_grouped = m_top.astype(jnp.int32).reshape(n_groups, G, u)
    context = _sparse_context(q, k, v, m_top_grouped, scale_v, G, vmem_limit)

    context = context.reshape(B, H, L_Q, D)
    context = jnp.transpose(context, (0, 2, 1, 3))           # (B, L_Q, H, D)
    return context, None


# ---------------------------------------------------------------------------
# Pure-JAX reference: original formulation / association (mirrors only the bf16
# operand casts the kernels use) for a correctness sanity check.
# ---------------------------------------------------------------------------
def _reference(queries, keys, values, rng_key, factor=5, scale=None):
    B, L_Q, H, D = queries.shape
    _, L_K, _, _ = keys.shape
    q = jnp.transpose(queries, (0, 2, 1, 3)).astype(jnp.bfloat16)
    k = jnp.transpose(keys, (0, 2, 1, 3)).astype(jnp.bfloat16)
    v = jnp.transpose(values, (0, 2, 1, 3)).astype(jnp.bfloat16)
    U_part = min(factor * int(math.ceil(math.log(L_K))), L_K)
    u = min(factor * int(math.ceil(math.log(L_Q))), L_Q)
    S = jnp.einsum("bhqd,bhkd->bhqk", q, k, preferred_element_type=jnp.float32)
    index_sample = jax.random.randint(rng_key, (L_Q, U_part), 0, L_K)
    qks = S[:, :, jnp.arange(L_Q)[:, None], index_sample]
    M = qks.max(-1) - qks.sum(-1) / L_K
    _, m_top = jax.lax.top_k(M, u)
    scores_top = jnp.take_along_axis(S, m_top[..., None], axis=2)
    scale_v = float(scale) if scale else 1.0 / math.sqrt(D)
    scores_top = scores_top * scale_v
    context = jnp.mean(v.astype(jnp.float32), axis=-2)[:, :, None, :]
    values_in = jnp.einsum("bhqd,bhvd->bhqv", q, v, preferred_element_type=jnp.float32)
    ctx_in = jnp.einsum("bhuk,bhkv->bhuv", scores_top, values_in,
                        precision=jax.lax.Precision.HIGHEST,
                        preferred_element_type=jnp.float32)
    return jnp.transpose(context + ctx_in, (0, 2, 1, 3))


if __name__ == "__main__":
    # Smallest shapes consistent with the module's broadcasting requirements:
    # factor=5, L=8 -> u = U_part = 8 = L_Q; D = L_V = 8 so context + context_in
    # broadcasts (the same regime the torch module requires to run at all).
    B, L, H, D = 2, 8, 4, 8
    key = jax.random.PRNGKey(0)
    kq, kk, kv, ksample = jax.random.split(key, 4)
    queries = jax.random.normal(kq, (B, L, H, D), dtype=jnp.float32)
    keys = jax.random.normal(kk, (B, L, H, D), dtype=jnp.float32)
    values = jax.random.normal(kv, (B, L, H, D), dtype=jnp.float32)

    context, attn = prob_attention_forward(
        queries, keys, values, attn_mask=None, rng_key=ksample, factor=5, scale=None)
    context = jax.block_until_ready(context)
    assert context.shape == (B, L, H, D)
    assert attn is None

    ref = np.asarray(jax.block_until_ready(
        _reference(queries, keys, values, ksample)), dtype=np.float32)
    got = np.asarray(context, dtype=np.float32)
    # Kernel uses bf16 MXU operands (including bf16 re-casts of the small
    # score/tmp intermediates) with f32 accumulation; compare with a
    # scale-normalized max error, which is the right metric for matmul chains.
    err = np.max(np.abs(got - ref)) / (np.max(np.abs(ref)) + 1e-6)
    assert err < 2e-2, f"normalized max error too large: {err:.4f}"
    print("KERNEL_OK")
</pallas_src>

<mosaic_0001>
module attributes {stable_mosaic.version = 11 : i64} {
  func.func @_sparsity_kernel(%arg0: i32, %arg1: memref<8x8xbf16, #tpu.memory_space<vmem>>, %arg2: memref<2x8x8xbf16, #tpu.memory_space<vmem>>, %arg3: memref<2x8x8xbf16, #tpu.memory_space<vmem>>, %arg4: memref<2x8x8xf32, #tpu.memory_space<vmem>>, %arg5: memref<1x2x8xf32, #tpu.memory_space<vmem>>) attributes {dimension_semantics = [#tpu.dimension_semantics<parallel>], iteration_bounds = array<i64: 4>, scalar_prefetch = 0 : i64, scratch_operands = 0 : i64, tpu.core_type = #tpu.core_type<tc>, window_params = [{pipeline_mode = #tpu.pipeline_mode<synchronous>, transform_indices = @transform_0, window_bounds = array<i64: 8, 8>}, {transform_indices = @transform_1, window_bounds = array<i64: 2, 8, 8>}, {transform_indices = @transform_2, window_bounds = array<i64: 2, 8, 8>}, {transform_indices = @transform_3, window_bounds = array<i64: 2, 8, 8>}, {transform_indices = @transform_4, window_bounds = array<i64: 1, 2, 8>}]} {
    %c0 = arith.constant 0 : index
    %c0_0 = arith.constant 0 : index
    %c0_1 = arith.constant 0 : index
    %0 = vector.load %arg2[%c0, %c0_0, %c0_1] : memref<2x8x8xbf16, #tpu.memory_space<vmem>>, vector<2x8x8xbf16>
    %c0_2 = arith.constant 0 : index
    %c0_3 = arith.constant 0 : index
    %c0_4 = arith.constant 0 : index
    %1 = vector.load %arg3[%c0_2, %c0_3, %c0_4] : memref<2x8x8xbf16, #tpu.memory_space<vmem>>, vector<2x8x8xbf16>
    %c0_5 = arith.constant 0 : index
    %c0_6 = arith.constant 0 : index
    %c0_7 = arith.constant 0 : index
    %2 = vector.load %arg4[%c0_5, %c0_6, %c0_7] : memref<2x8x8xf32, #tpu.memory_space<vmem>>, vector<2x8x8xf32>
    %c0_8 = arith.constant 0 : index
    %c0_9 = arith.constant 0 : index
    %3 = vector.load %arg1[%c0_8, %c0_9] : memref<8x8xbf16, #tpu.memory_space<vmem>>, vector<8x8xbf16>
    %4 = arith.extf %3 : vector<8x8xbf16> to vector<8x8xf32>
    %cst = arith.constant dense<0.000000e+00> : vector<2x8x8xf32>
    %5 = tpu.matmul %0, %1, %cst {dimension_numbers = #tpu.dot_dimension_numbers<[2], [2], [1], [1], [0, 0, 0, 1, 1, 1], [0], [0]>} : vector<2x8x8xbf16>, vector<2x8x8xbf16>, vector<2x8x8xf32> -> vector<2x8x8xf32>
    %6 = vector.shape_cast %4 : vector<8x8xf32> to vector<1x8x8xf32>
    %7 = vector.broadcast %6 : vector<1x8x8xf32> to vector<2x8x8xf32>
    %8 = arith.addf %5, %7 : vector<2x8x8xf32>
    %cst_10 = arith.constant dense<0xFF800000> : vector<2x8xf32>
    %9 = vector.multi_reduction <maximumf>, %8, %cst_10 [2] : vector<2x8x8xf32> to vector<2x8xf32>
    %10 = arith.extf %0 : vector<2x8x8xbf16> to vector<2x8x8xf32>
    %11 = arith.mulf %10, %2 : vector<2x8x8xf32>
    %cst_11 = arith.constant dense<0.000000e+00> : vector<2x8xf32>
    %12 = vector.multi_reduction <add>, %11, %cst_11 [2] : vector<2x8x8xf32> to vector<2x8xf32>
    %cst_12 = arith.constant 1.250000e-01 : f32
    %13 = vector.broadcast %cst_12 : f32 to vector<2x8xf32>
    %14 = arith.mulf %12, %13 : vector<2x8xf32>
    %15 = arith.subf %9, %14 : vector<2x8xf32>
    %c0_13 = arith.constant 0 : index
    %c0_14 = arith.constant 0 : index
    %c0_15 = arith.constant 0 : index
    %16 = vector.load %arg5[%c0_13, %c0_14, %c0_15] : memref<1x2x8xf32, #tpu.memory_space<vmem>>, vector<1x2x8xf32>
    %17 = vector.shape_cast %16 : vector<1x2x8xf32> to vector<2x8xf32>
    %18 = vector.shape_cast %15 : vector<2x8xf32> to vector<1x2x8xf32>
    tpu.vector_store %arg5[%c0_13, %c0_14, %c0_15], %18 {strides = array<i32>} : memref<1x2x8xf32, #tpu.memory_space<vmem>>, vector<1x2x8xf32>,
    return
  }
  func.func @transform_0(%arg0: i32) -> (i32, i32) {
    %c0_i32 = arith.constant 0 : i32
    %c0_i32_0 = arith.constant 0 : i32
    %c0_i32_1 = arith.constant 0 : i32
    return %c0_i32, %c0_i32_0 : i32, i32
  }
  func.func @transform_1(%arg0: i32) -> (i32, i32, i32) {
    %c0_i32 = arith.constant 0 : i32
    %c0_i32_0 = arith.constant 0 : i32
    %c0_i32_1 = arith.constant 0 : i32
    return %arg0, %c0_i32, %c0_i32_0 : i32, i32, i32
  }
  func.func @transform_2(%arg0: i32) -> (i32, i32, i32) {
    %c0_i32 = arith.constant 0 : i32
    %c0_i32_0 = arith.constant 0 : i32
    %c0_i32_1 = arith.constant 0 : i32
    return %arg0, %c0_i32, %c0_i32_0 : i32, i32, i32
  }
  func.func @transform_3(%arg0: i32) -> (i32, i32, i32) {
    %c0_i32 = arith.constant 0 : i32
    %c0_i32_0 = arith.constant 0 : i32
    %c0_i32_1 = arith.constant 0 : i32
    return %arg0, %c0_i32, %c0_i32_0 : i32, i32, i32
  }
  func.func @transform_4(%arg0: i32) -> (i32, i32, i32) {
    %c0_i32 = arith.constant 0 : i32
    %c0_i32_0 = arith.constant 0 : i32
    %c0_i32_1 = arith.constant 0 : i32
    return %arg0, %c0_i32, %c0_i32_0 : i32, i32, i32
  }
}

</mosaic_0001>

<llo_original>
// kernel: tpu_custom_call.1
$region0: #{tpu_custom_call.1}
  #allocation0 [shape = 'u32[]', space=smem, size = 0x4, offset = 0x4, fixed_abs, tag = 'smem constant byte address 0x4 - core index']
  #allocation1 [shape = 'u32[144,128]{1,0:T(1,128)}', space=vmem, size = 0x12000, scoped, tag = 'internal scratch']
  %s0 = inlined_call_operand.hbm [shape: bf16[8,8], index: 0, kind: input, shape index: {}]
  %s1 = inlined_call_operand.hbm [shape: bf16[8,8,8], index: 1, kind: input, shape index: {}]
  %s2 = inlined_call_operand.hbm [shape: bf16[8,8,8], index: 2, kind: input, shape index: {}]
  %s3 = inlined_call_operand.hbm [shape: f32[8,8,8], index: 3, kind: input, shape index: {}]
  %s4 = inlined_call_operand.hbm [shape: f32[4,2,8], index: 4, kind: output, shape index: {}]
  %s5 = sld [smem:[#allocation0]]
  $region65: #{tpu_custom_call.1} parent=0
    _
  %s7 = ssub.s32 1, %s5
  %s8 = scalar_select 0, %s7, %s5
  $region1: #{tpu_custom_call.1} parent=0
    #allocation2 [shape = 'u8[2048]{0}', space=vmem, size = 0x800, scoped, tag = 'input window, operand 0, single buffered']
    #allocation3 [shape = 's32[2]{0}', space=sflag, size = 0x8, scoped, tag = 'scoped memory for tpu_custom_call.1']
    #allocation4 [shape = 's32[2]{0}', space=sflag, size = 0x8, scoped, tag = 'scoped memory for tpu_custom_call.1']
    #allocation5 [shape = 'u8[8192]{0}', space=vmem, size = 0x2000, scoped, tag = 'input window, operand 1']
    #allocation6 [shape = 's32[2]{0}', space=sflag, size = 0x8, scoped, tag = 'scoped memory for tpu_custom_call.1']
    #allocation7 [shape = 'u8[8192]{0}', space=vmem, size = 0x2000, scoped, tag = 'input window, operand 2']
    #allocation8 [shape = 'u8[16384]{0}', space=vmem, size = 0x4000, scoped, tag = 'input window, operand 3']
    #allocation9 [shape = 's32[2]{0}', space=sflag, size = 0x8, scoped, tag = 'scoped memory for tpu_custom_call.1']
    #allocation10 [shape = 'u8[2048]{0}', space=vmem, size = 0x800, scoped, tag = 'output window, operand 0']
    %9 = vsyncpa [#allocation3], 0
    %10 = vsyncpa [#allocation6], 0
    %s11 = scalar_lea.sflag [#allocation6], 1
    %12 = vsyncpa %s11, 0
    %13 = vsyncpa [#allocation9], 0
    %s14 = scalar_lea.sflag [#allocation9], 1
    %15 = vsyncpa %s14, 0
    %16 = vsyncpa [#allocation4], 0
    %s17 = scalar_lea.sflag [#allocation4], 1
    %18 = vsyncpa %s17, 0
    loop: start=0, step=1, limit=6
    $region2: #{tpu_custom_call.1} parent=1 // loop_pre_header
      _
    $region3: #{tpu_custom_call.1} parent=1 // loop_header
      %s20 = sphi 0, %s24
      %p21 = scmp.ge.s32.totalorder %s20, 6
      %s28 = sphi 0, %s28
      %s30 = sphi 0, %s28
      %s31 = sphi 0, %s30
      %s45 = sphi 0, %s31
      %s51 = sphi 0, %s53
      %s54 = sphi 0, %s51
      %s55 = sphi 0, %s54
      %s71 = sphi 0, %s55
      %s77 = sphi 0, %s79
      %s80 = sphi 0, %s77
      %s81 = sphi 0, %s80
      %s97 = sphi 0, %s81
      %s103 = sphi 0, %s105
      %s106 = sphi 0, %s103
      %s107 = sphi 0, %s106
      %s123 = sphi 0, %s107
      %s129 = sphi 0, %s131
      %s132 = sphi 0, %s129
      %s133 = sphi 0, %s132
      %s149 = sphi 0, %s133
    $region4: #{tpu_custom_call.1} parent=1 // loop_header_branch
      %23 = sbr.rel (%p21) target = $region8
    $region5: #{tpu_custom_call.1} parent=1 // loop_body
      %s25 = ssub.s32 %s20, 1
      %s26 = ssub.s32 %s20, 2
      %s27 = sadd.s32 %s20, 1
      %s29 = sadd.s32 %s28, 1
      %p32 = scmp.eq.s32.totalorder %s20, 3
      %p33 = scmp.ne.s32.totalorder %s28, %s30
      %p34 = scmp.eq.s32.totalorder %s20, 0
      %p35 = por %p33, %p34
      %p36 = scmp.ne.s32.totalorder %s28, %s30
      %p37 = scmp.eq.s32.totalorder %s25, 3
      %p38 = por %p36, %p37
      %p39 = scmp.ne.s32.totalorder %s30, %s31
      %p40 = scmp.eq.s32.totalorder %s25, 0
      %p41 = por %p39, %p40
      %p42 = scmp.ne.s32.totalorder %s30, %s31
      %p43 = scmp.eq.s32.totalorder %s26, 3
      %p44 = por %p42, %p43
      %p46 = scmp.ne.s32.totalorder %s31, %s45
      %p47 = scmp.eq.s32.totalorder %s26, 0
      %p48 = por %p46, %p47
      %s49 = ssub.s32 %s20, %s27
      %p50 = scmp.eq.s32.totalorder %s49, 0
      %s52 = sadd.s32 %s51, 1
      %s53 = scalar_select %p50, %s51, %s52
      %p56 = pneg %p50
      %p57 = scmp.eq.s32.totalorder %s20, 3
      %p58 = por %p56, %p57
      %p59 = scmp.ne.s32.totalorder %s51, %s54
      %p60 = scmp.eq.s32.totalorder %s20, 0
      %p61 = por %p59, %p60
      %p62 = scmp.ne.s32.totalorder %s51, %s54
      %p63 = scmp.eq.s32.totalorder %s25, 3
      %p64 = por %p62, %p63
      %p65 = scmp.ne.s32.totalorder %s54, %s55
      %p66 = scmp.eq.s32.totalorder %s25, 0
      %p67 = por %p65, %p66
      %p68 = scmp.ne.s32.totalorder %s54, %s55
      %p69 = scmp.eq.s32.totalorder %s26, 3
      %p70 = por %p68, %p69
      %p72 = scmp.ne.s32.totalorder %s55, %s71
      %p73 = scmp.eq.s32.totalorder %s26, 0
      %p74 = por %p72, %p73
      %s75 = ssub.s32 %s20, %s27
      %p76 = scmp.eq.s32.totalorder %s75, 0
      %s78 = sadd.s32 %s77, 1
      %s79 = scalar_select %p76, %s77, %s78
      %p82 = pneg %p76
      %p83 = scmp.eq.s32.totalorder %s20, 3
      %p84 = por %p82, %p83
      %p85 = scmp.ne.s32.totalorder %s77, %s80
      %p86 = scmp.eq.s32.totalorder %s20, 0
      %p87 = por %p85, %p86
      %p88 = scmp.ne.s32.totalorder %s77, %s80
      %p89 = scmp.eq.s32.totalorder %s25, 3
      %p90 = por %p88, %p89
      %p91 = scmp.ne.s32.totalorder %s80, %s81
      %p92 = scmp.eq.s32.totalorder %s25, 0
      %p93 = por %p91, %p92
      %p94 = scmp.ne.s32.totalorder %s80, %s81
      %p95 = scmp.eq.s32.totalorder %s26, 3
      %p96 = por %p94, %p95
      %p98 = scmp.ne.s32.totalorder %s81, %s97
      %p99 = scmp.eq.s32.totalorder %s26, 0
      %p100 = por %p98, %p99
      %s101 = ssub.s32 %s20, %s27
      %p102 = scmp.eq.s32.totalorder %s101, 0
      %s104 = sadd.s32 %s103, 1
      %s105 = scalar_select %p102, %s103, %s104
      %p108 = pneg %p102
      %p109 = scmp.eq.s32.totalorder %s20, 3
      %p110 = por %p108, %p109
      %p111 = scmp.ne.s32.totalorder %s103, %s106
      %p112 = scmp.eq.s32.totalorder %s20, 0
      %p113 = por %p111, %p112
      %p114 = scmp.ne.s32.totalorder %s103, %s106
      %p115 = scmp.eq.s32.totalorder %s25, 3
      %p116 = por %p114, %p115
      %p117 = scmp.ne.s32.totalorder %s106, %s107
      %p118 = scmp.eq.s32.totalorder %s25, 0
      %p119 = por %p117, %p118
      %p120 = scmp.ne.s32.totalorder %s106, %s107
      %p121 = scmp.eq.s32.totalorder %s26, 3
      %p122 = por %p120, %p121
      %p124 = scmp.ne.s32.totalorder %s107, %s123
      %p125 = scmp.eq.s32.totalorder %s26, 0
      %p126 = por %p124, %p125
      %s127 = ssub.s32 %s20, %s27
      %p128 = scmp.eq.s32.totalorder %s127, 0
      %s130 = sadd.s32 %s129, 1
      %s131 = scalar_select %p128, %s129, %s130
      %p134 = pneg %p128
      %p135 = scmp.eq.s32.totalorder %s20, 3
      %p136 = por %p134, %p135
      %p137 = scmp.ne.s32.totalorder %s129, %s132
      %p138 = scmp.eq.s32.totalorder %s20, 0
      %p139 = por %p137, %p138
      %p140 = scmp.ne.s32.totalorder %s129, %s132
      %p141 = scmp.eq.s32.totalorder %s25, 3
      %p142 = por %p140, %p141
      %p143 = scmp.ne.s32.totalorder %s132, %s133
      %p144 = scmp.eq.s32.totalorder %s25, 0
      %p145 = por %p143, %p144
      %p146 = scmp.ne.s32.totalorder %s132, %s133
      %p147 = scmp.eq.s32.totalorder %s26, 3
      %p148 = por %p146, %p147
      %p150 = scmp.ne.s32.totalorder %s133, %s149
      %p151 = scmp.eq.s32.totalorder %s26, 0
      %p152 = por %p150, %p151
      %p153 = scmp.le.s32.totalorder 1, %s20
      %p154 = scmp.lt.s32.totalorder %s20, 5
      %p155 = pnand %p153, %p154
      %p156 = pneg %p155
      // Predicated region
      $region9: #{tpu_custom_call.1} parent=5 // pred_check
        _
      $region10: #{tpu_custom_call.1} parent=5 // pred_check_branch
        %158 = sbr.rel (%p155) target = $region12
      $region11: #{tpu_custom_call.1} parent=5 // pred_region
        %s159 = ssub.s32 %s20, 1
        // Predicated region
        $region13: #{tpu_custom_call.1} parent=11 // pred_check
          %p160 = pneg %p41
        $region14: #{tpu_custom_call.1} parent=11 // pred_check_branch
          %162 = sbr.rel (%p160) target = $region16
        $region15: #{tpu_custom_call.1} parent=11 // pred_region
          %s164 = ssub.s32 64, 64
          %165 = vsyncadd [#allocation3], %s164
          %s167 = sshll.u32 [#allocation2], 4
          %s168 = int_to_ptr.vmem [resolvable:$true] %s167
          %170 = dma.hbm_to_vmem [thread:$0]  %s0, 64, %s168, [#allocation3]
        $region16: #{tpu_custom_call.1} parent=11 // pred_fallthru
          _
      $region12: #{tpu_custom_call.1} parent=5 // pred_fallthru
        _
      %p171 = scmp.lt.s32.totalorder %s20, 4
      // Predicated region
      $region17: #{tpu_custom_call.1} parent=5 // pred_check
        %p172 = pneg %p171
      $region18: #{tpu_custom_call.1} parent=5 // pred_check_branch
        %174 = sbr.rel (%p172) target = $region20
      $region19: #{tpu_custom_call.1} parent=5 // pred_region
        // Predicated region
        $region21: #{tpu_custom_call.1} parent=19 // pred_check
          %p175 = pneg %p61
        $region22: #{tpu_custom_call.1} parent=19 // pred_check_branch
          %177 = sbr.rel (%p175) target = $region24
        $region23: #{tpu_custom_call.1} parent=19 // pred_region
          %s178 = sand.u32 %s20, 1
          %s179 = scalar_lea.sflag [#allocation6], %s178
          %s180 = sand.u32 %s51, 1
          %s181 = smul.addr %s180, 8
          %s182 = scalar_lea.vmem [#allocation5], %s181
          %s183 = smul.u32 2, %s20
          %s185 = ssub.s32 128, 128
          %186 = vsyncadd %s179, %s185
          %s187 = smul.addr %s183, 64
          %s188 = scalar_lea.hbm %s1, %s187
          %s189 = sshll.u32 %s182, 4
          %s190 = int_to_ptr.vmem [resolvable:$true] %s189
          %195 = dma.hbm_to_vmem [thread:$0]  %s188, 128, %s190, %s179, 64, 64, 4
        $region24: #{tpu_custom_call.1} parent=19 // pred_fallthru
          _
        // Predicated region
        $region25: #{tpu_custom_call.1} parent=19 // pred_check
          %p196 = pneg %p87
        $region26: #{tpu_custom_call.1} parent=19 // pred_check_branch
          %198 = sbr.rel (%p196) target = $region28
        $region27: #{tpu_custom_call.1} parent=19 // pred_region
          %s199 = sand.u32 %s20, 1
          %s200 = scalar_lea.sflag [#allocation6], %s199
          %s201 = sand.u32 %s77, 1
          %s202 = smul.addr %s201, 8
          %s203 = scalar_lea.vmem [#allocation7], %s202
          %s204 = smul.u32 2, %s20
          %s206 = ssub.s32 128, 128
          %207 = vsyncadd %s200, %s206
          %s208 = smul.addr %s204, 64
          %s209 = scalar_lea.hbm %s2, %s208
          %s210 = sshll.u32 %s203, 4
          %s211 = int_to_ptr.vmem [resolvable:$true] %s210
          %216 = dma.hbm_to_vmem [thread:$0]  %s209, 128, %s211, %s200, 64, 64, 4
        $region28: #{tpu_custom_call.1} parent=19 // pred_fallthru
          _
        // Predicated region
        $region29: #{tpu_custom_call.1} parent=19 // pred_check
          %p217 = pneg %p113
        $region30: #{tpu_custom_call.1} parent=19 // pred_check_branch
          %219 = sbr.rel (%p217) target = $region32
        $region31: #{tpu_custom_call.1} parent=19 // pred_region
          %s220 = sand.u32 %s103, 1
          %s221 = scalar_lea.sflag [#allocation9], %s220
          %s222 = sand.u32 %s103, 1
          %s223 = smul.addr %s222, 16
          %s224 = scalar_lea.vmem [#allocation8], %s223
          %s225 = smul.u32 2, %s20
          %s227 = ssub.s32 256, 256
          %228 = vsyncadd %s221, %s227
          %s229 = smul.addr %s225, 128
          %s230 = scalar_lea.hbm %s3, %s229
          %s231 = sshll.u32 %s224, 4
          %s232 = int_to_ptr.vmem [resolvable:$true] %s231
          %237 = dma.hbm_to_vmem [thread:$0]  %s230, 256, %s232, %s221, 128, 128, 8
        $region32: #{tpu_custom_call.1} parent=19 // pred_fallthru
          _
      $region20: #{tpu_custom_call.1} parent=5 // pred_fallthru
        _
      %p238 = scmp.le.s32.totalorder 1, %s20
      %p239 = scmp.lt.s32.totalorder %s20, 5
      %p240 = pnand %p238, %p239
      %p241 = pneg %p240
      // Predicated region
      $region33: #{tpu_custom_call.1} parent=5 // pred_check
        _
      $region34: #{tpu_custom_call.1} parent=5 // pred_check_branch
        %243 = sbr.rel (%p240) target = $region36
      $region35: #{tpu_custom_call.1} parent=5 // pred_region
        %s244 = ssub.s32 %s20, 1
        // Predicated region
        $region37: #{tpu_custom_call.1} parent=35 // pred_check
          %p245 = pneg %p41
        $region38: #{tpu_custom_call.1} parent=35 // pred_check_branch
          %247 = sbr.rel (%p245) target = $region40
        $region39: #{tpu_custom_call.1} parent=35 // pred_region
          %248 = dma.done [#allocation3], 64
        $region40: #{tpu_custom_call.1} parent=35 // pred_fallthru
          _
        %s249 = sand.u32 %s25, 1
        %s250 = scalar_lea.sflag [#allocation6], %s249
        %s251 = sand.u32 %s54, 1
        %s252 = smul.addr %s251, 8
        %s253 = scalar_lea.vmem [#allocation5], %s252
        // Predicated region
        $region41: #{tpu_custom_call.1} parent=35 // pred_check
          %p254 = pneg %p67
        $region42: #{tpu_custom_call.1} parent=35 // pred_check_branch
          %256 = sbr.rel (%p254) target = $region44
        $region43: #{tpu_custom_call.1} parent=35 // pred_region
          %257 = dma.done %s250, 128
        $region44: #{tpu_custom_call.1} parent=35 // pred_fallthru
          _
        %s258 = sand.u32 %s25, 1
        %s259 = scalar_lea.sflag [#allocation6], %s258
        %s260 = sand.u32 %s80, 1
        %s261 = smul.addr %s260, 8
        %s262 = scalar_lea.vmem [#allocation7], %s261
        // Predicated region
        $region45: #{tpu_custom_call.1} parent=35 // pred_check
          %p263 = pneg %p93
        $region46: #{tpu_custom_call.1} parent=35 // pred_check_branch
          %265 = sbr.rel (%p263) target = $region48
        $region47: #{tpu_custom_call.1} parent=35 // pred_region
          %266 = dma.done %s259, 128
        $region48: #{tpu_custom_call.1} parent=35 // pred_fallthru
          _
        %s267 = sand.u32 %s106, 1
        %s268 = scalar_lea.sflag [#allocation9], %s267
        %s269 = sand.u32 %s106, 1
        %s270 = smul.addr %s269, 16
        %s271 = scalar_lea.vmem [#allocation8], %s270
        // Predicated region
        $region49: #{tpu_custom_call.1} parent=35 // pred_check
          %p272 = pneg %p119
        $region50: #{tpu_custom_call.1} parent=35 // pred_check_branch
          %274 = sbr.rel (%p272) target = $region52
        $region51: #{tpu_custom_call.1} parent=35 // pred_region
          %275 = dma.done %s268, 256
        $region52: #{tpu_custom_call.1} parent=35 // pred_fallthru
          _
        %p276 = pneg %p41
        %p277 = pneg %p38
        %s278 = sand.u32 %s25, 1
        %s279 = scalar_lea.sflag [#allocation6], %s278
        %s280 = sand.u32 %s54, 1
        %s281 = smul.addr %s280, 8
        %s282 = scalar_lea.vmem [#allocation5], %s281
        %p283 = pneg %p67
        %p284 = pneg %p64
        %s285 = sand.u32 %s25, 1
        %s286 = scalar_lea.sflag [#allocation6], %s285
        %s287 = sand.u32 %s80, 1
        %s288 = smul.addr %s287, 8
        %s289 = scalar_lea.vmem [#allocation7], %s288
        %p290 = pneg %p93
        %p291 = pneg %p90
        %s292 = sand.u32 %s106, 1
        %s293 = scalar_lea.sflag [#allocation9], %s292
        %s294 = sand.u32 %s106, 1
        %s295 = smul.addr %s294, 16
        %s296 = scalar_lea.vmem [#allocation8], %s295
        %p297 = pneg %p119
        %p298 = pneg %p116
        %p299 = pneg %p145
        %p300 = pneg %p142
        %s301 = sand.u32 %s132, 1
        %s302 = scalar_lea.sflag [#allocation4], %s301
        %s303 = sand.u32 %s132, 1
        %s304 = smul.addr %s303, 2
        %s305 = scalar_lea.vmem [#allocation10], %s304
        %s306 = smul.u32 2, %s25
        %s307 = smul.u32 2, %s25
        %s308 = smul.u32 2, %s25
        %v310 = vld [vmem:[%s253] sm:$0xf]
        %v311 = vld [vmem:[%s253 + $0x4] sm:$0xf]
        %v312 = vld [vmem:[%s262] sm:$0xf]
        %v313 = vld [vmem:[%s262 + $0x4] sm:$0xf]
        %v314 = vld [vmem:[%s271] sm:$0xff]
        %v315 = vld [vmem:[%s271 + $0x8] sm:$0xff]
        %v316 = vld [vmem:[#allocation2] sm:$0xf]
        %v317 = vunpack.c.l.bf16 %v316
        %vm318 = vcmask 64512
        %v320 = vsel %vm318, %v310, 0
        %v323 = vsel %vm318, %v312, 0
        %325 = vmatprep.subr.bf16.mxu0 0
        %326 = vmatpush1.bf16.xpose.msra.mxu0 %v323
        %327 = vmatprep.subr.bf16.mxu0 0
        %328 = vmatpush1.bf16.xpose.msra.mxu0 0
        %329 = vmatprep.subr.bf16.mxu0 0
        %330 = vmatpush1.bf16.xpose.msra.mxu0 0
        %331 = vmatprep.subr.bf16.mxu0 0
        %332 = vmatpush1.bf16.xpose.msra.mxu0 0
        %333 = vmatprep.subr.bf16.mxu0 0
        %334 = vmatpush1.bf16.xpose.msra.mxu0 0
        %335 = vmatprep.subr.bf16.mxu0 0
        %336 = vmatpush1.bf16.xpose.msra.mxu0 0
        %337 = vmatprep.subr.bf16.mxu0 0
        %338 = vmatpush1.bf16.xpose.msra.mxu0 0
        %339 = vmatprep.subr.bf16.mxu0 0
        %340 = vmatpush1.bf16.xpose.msra.mxu0 0
        %341 = vmatprep.subr.bf16.mxu0 0
        %342 = vmatpush1.bf16.xpose.msra.mxu0 0
        %343 = vmatprep.subr.bf16.mxu0 0
        %344 = vmatpush1.bf16.xpose.msra.mxu0 0
        %345 = vmatprep.subr.bf16.mxu0 0
        %346 = vmatpush1.bf16.xpose.msra.mxu0 0
        %347 = vmatprep.subr.bf16.mxu0 0
        %348 = vmatpush1.bf16.xpose.msra.mxu0 0
        %349 = vmatprep.subr.bf16.mxu0 0
        %350 = vmatpush1.bf16.xpose.msra.mxu0 0
        %351 = vmatprep.subr.bf16.mxu0 0
        %352 = vmatpush1.bf16.xpose.msra.mxu0 0
        %353 = vmatprep.subr.bf16.mxu0 0
        %354 = vmatpush1.bf16.xpose.msra.mxu0 0
        %355 = vmatprep.subr.bf16.mxu0 0
        %356 = vmatpush1.bf16.xpose.msra.mxu0 0
        %357 = vmatprep.mubr.bf16.mxu0 0
        %358 = vmatmul.mubr.bf16.gmra.mrb[0].mxu0 %v320
        %v359 = vpop.f32.mrb[0].mxu0
        %v360 = vadd.f32 %v317, %v359
        %v361 = vpop.f32.mrb[0].mxu0
        %v362 = vpop.f32.mrb[0].mxu0
        %v363 = vpop.f32.mrb[0].mxu0
        %364 = vdwg.mxu0
        %v366 = vsel %vm318, %v311, 0
        %v369 = vsel %vm318, %v313, 0
        %371 = vmatprep.subr.bf16.mxu0 0
        %372 = vmatpush1.bf16.xpose.msra.mxu0 %v369
        %373 = vmatprep.subr.bf16.mxu0 0
        %374 = vmatpush1.bf16.xpose.msra.mxu0 0
        %375 = vmatprep.subr.bf16.mxu0 0
        %376 = vmatpush1.bf16.xpose.msra.mxu0 0
        %377 = vmatprep.subr.bf16.mxu0 0
        %378 = vmatpush1.bf16.xpose.msra.mxu0 0
        %379 = vmatprep.subr.bf16.mxu0 0
        %380 = vmatpush1.bf16.xpose.msra.mxu0 0
        %381 = vmatprep.subr.bf16.mxu0 0
        %382 = vmatpush1.bf16.xpose.msra.mxu0 0
        %383 = vmatprep.subr.bf16.mxu0 0
        %384 = vmatpush1.bf16.xpose.msra.mxu0 0
        %385 = vmatprep.subr.bf16.mxu0 0
        %386 = vmatpush1.bf16.xpose.msra.mxu0 0
        %387 = vmatprep.subr.bf16.mxu0 0
        %388 = vmatpush1.bf16.xpose.msra.mxu0 0
        %389 = vmatprep.subr.bf16.mxu0 0
        %390 = vmatpush1.bf16.xpose.msra.mxu0 0
        %391 = vmatprep.subr.bf16.mxu0 0
        %392 = vmatpush1.bf16.xpose.msra.mxu0 0
        %393 = vmatprep.subr.bf16.mxu0 0
        %394 = vmatpush1.bf16.xpose.msra.mxu0 0
        %395 = vmatprep.subr.bf16.mxu0 0
        %396 = vmatpush1.bf16.xpose.msra.mxu0 0
        %397 = vmatprep.subr.bf16.mxu0 0
        %398 = vmatpush1.bf16.xpose.msra.mxu0 0
        %399 = vmatprep.subr.bf16.mxu0 0
        %400 = vmatpush1.bf16.xpose.msra.mxu0 0
        %401 = vmatprep.subr.bf16.mxu0 0
        %402 = vmatpush1.bf16.xpose.msra.mxu0 0
        %403 = vmatprep.mubr.bf16.mxu0 0
        %404 = vmatmul.mubr.bf16.gmra.mrb[0].mxu0 %v366
        %v405 = vpop.f32.mrb[0].mxu0
        %v406 = vadd.f32 %v317, %v405
        %v407 = vpop.f32.mrb[0].mxu0
        %v408 = vpop.f32.mrb[0].mxu0
        %v409 = vpop.f32.mrb[0].mxu0
        %410 = vdwg.mxu0
        %v411 = vsel %vm318, %v360, -inf
        %412 = vmax.xlane.f32.xlu0 %v411
        %v413 = vpop.xlane.xlu0 %412
        %v414 = vsel %vm318, %v406, -inf
        %415 = vmax.xlane.f32.xlu0 %v414
        %v416 = vpop.xlane.xlu0 %415
        %v417 = vunpack.c.l.bf16 %v310
        %v418 = vunpack.c.l.bf16 %v311
        %v419 = vmul.f32 %v417, %v314
        %v420 = vmul.f32 %v418, %v315
        %v421 = vsel %vm318, %v419, 0.0
        %422 = vadd.xlane.f32.xlu0 %v421
        %v423 = vpop.xlane.xlu0 %422
        %v424 = vsel %vm318, %v420, 0.0
        %425 = vadd.xlane.f32.xlu0 %v424
        %v426 = vpop.xlane.xlu0 %425
        %v427 = vmul.f32 %v423, 0.125
        %v428 = vmul.f32 %v426, 0.125
        %v429 = vsub.f32 %v413, %v427
        %v430 = vsub.f32 %v416, %v428
        %v433 = vlaneseq
        %v434 = vand.u32 %v433, 127
        %v435 = vlaneseq
        %v436 = vshrl.u32 %v435, 7
        %v437 = vsub.s32 %v434, %v436
        %v438 = vrot.slane %v429, %v437
        %v439 = vlaneseq
        %v440 = vshrl.u32 %v439, 7
        %v441 = vsub.s32 %v434, %v440
        %v442 = vrot.slane %v430, %v441
        %vm443 = vcmask 1041409
        %v444 = vsel %vm443, %v442, %v438
        %vm446 = vcmask 58368
        %447 = vst.msk [vmem:[%s305] sm:$0x3] %vm446, %v444
        %s448 = sand.u32 %s132, 1
        %s449 = scalar_lea.sflag [#allocation4], %s448
        %s450 = sand.u32 %s132, 1
        %s451 = smul.addr %s450, 2
        %s452 = scalar_lea.vmem [#allocation10], %s451
        // Predicated region
        $region53: #{tpu_custom_call.1} parent=35 // pred_check
          %p453 = pneg %p142
        $region54: #{tpu_custom_call.1} parent=35 // pred_check_branch
          %455 = sbr.rel (%p453) target = $region56
        $region55: #{tpu_custom_call.1} parent=35 // pred_region
          %s457 = ssub.s32 32, 32
          %458 = vsyncadd %s449, %s457
          %s459 = smul.addr %s25, 32
          %s460 = scalar_lea.hbm %s4, %s459
          %s462 = sshll.u32 %s452, 4
          %s463 = int_to_ptr.vmem [resolvable:$true] %s462
          %465 = dma.vmem_to_hbm [thread:$0]  %s463, 32, %s460, %s449
        $region56: #{tpu_custom_call.1} parent=35 // pred_fallthru
          _
      $region36: #{tpu_custom_call.1} parent=5 // pred_fallthru
        _
      %p466 = scmp.le.s32.totalorder 2, %s20
      // Predicated region
      $region57: #{tpu_custom_call.1} parent=5 // pred_check
        %p467 = pneg %p466
      $region58: #{tpu_custom_call.1} parent=5 // pred_check_branch
        %469 = sbr.rel (%p467) target = $region60
      $region59: #{tpu_custom_call.1} parent=5 // pred_region
        %s470 = ssub.s32 %s20, 2
        // Predicated region
        $region61: #{tpu_custom_call.1} parent=59 // pred_check
          %p471 = pneg %p148
        $region62: #{tpu_custom_call.1} parent=59 // pred_check_branch
          %473 = sbr.rel (%p471) target = $region64
        $region63: #{tpu_custom_call.1} parent=59 // pred_region
          %s474 = sand.u32 %s133, 1
          %s475 = scalar_lea.sflag [#allocation4], %s474
          %s476 = sand.u32 %s133, 1
          %s477 = smul.addr %s476, 2
          %s478 = scalar_lea.vmem [#allocation10], %s477
          %479 = dma.done %s475, 32
        $region64: #{tpu_custom_call.1} parent=59 // pred_fallthru
          _
      $region60: #{tpu_custom_call.1} parent=5 // pred_fallthru
        _
    $region6: #{tpu_custom_call.1} parent=1 // loop_footer
      %s24 = sadd.s32 1, %s20
    $region7: #{tpu_custom_call.1} parent=1 // loop_footer_branch
      %19 = sbr.rel target = $region3
    $region8: #{tpu_custom_call.1} parent=1 // loop_exit
      _
    %480 = vsyncpa [#allocation3], 1
    %s481 = scalar_lea.sflag [#allocation3], 1
    %482 = vsyncpa %s481, 1
    %483 = vsyncpa [#allocation6], 1
    %s484 = scalar_lea.sflag [#allocation6], 1
    %485 = vsyncpa %s484, 1
    %486 = vsyncpa [#allocation9], 1
    %s487 = scalar_lea.sflag [#allocation9], 1
    %488 = vsyncpa %s487, 1
    %489 = vsyncpa [#allocation4], 1
    %s490 = scalar_lea.sflag [#allocation4], 1
    %491 = vsyncpa %s490, 1

</llo_original>
